<compile_context>
chip_gen: v7x
topology: tpu7x:2x2x1
jax: 0.10.0
libtpu: 0.0.40
codegen_flags: <defaults>
</compile_context>

<pallas_src>
import functools

import jax
import jax.numpy as jnp
from jax.experimental import pallas as pl
from jax.experimental.pallas import tpu as pltpu


def _round_up(x, m):
    return ((x + m - 1) // m) * m


def _emd_kernel(yt_ref, yp_ref, out_ref, tri_ref, acc_ref, *,
                n_true, bt, np_pad, compute_dtype):
    i = pl.program_id(1)  # reduction axis (batch tiles handled by this core)

    @pl.when(i == 0)
    def _init():
        acc_ref[...] = jnp.zeros_like(acc_ref)
        # Upper-triangular cumsum operator: tri[j, c] = 1 if j <= c.
        # Padded output columns (c >= n_true) are zeroed so the repeated
        # cumsum tail of the padded region contributes nothing.
        row = jax.lax.broadcasted_iota(jnp.int32, (np_pad, np_pad), 0)
        col = jax.lax.broadcasted_iota(jnp.int32, (np_pad, np_pad), 1)
        tri_ref[...] = ((row <= col) & (col < n_true)).astype(tri_ref.dtype)

    # Difference of the two distributions for this batch tile
    # (padded batch rows are zero -> zero contribution).
    d = yt_ref[...].astype(jnp.float32) - yp_ref[...].astype(jnp.float32)
    d = d.astype(compute_dtype)

    # cumsum along the last axis on the MXU: c[b, k] = sum_{j <= k} d[b, j]
    c = jnp.dot(d, tri_ref[...], preferred_element_type=jnp.float32)
    sq = c * c  # (bt, np_pad) f32

    # Fold into a single vreg-shaped (8, 128) partial sum with tile-aligned
    # VPU slice-adds (no per-step cross-lane XLU reduction, no scalar RMW).
    s = sq[0:8, :]
    for g in range(1, bt // 8):
        s = s + sq[8 * g:8 * (g + 1), :]
    t = s[:, 0:128]
    for h in range(1, np_pad // 128):
        t = t + s[:, 128 * h:128 * (h + 1)]
    acc_ref[...] += t

    @pl.when(i == pl.num_programs(1) - 1)
    def _fin():
        out_ref[...] = acc_ref[...]


def emd_loss(y_true, y_pred, *, batch_tile=None, num_parallel=2, use_bf16=False):
    """Earth Mover distance loss (matches torch EMDLoss.forward).

    y_true, y_pred: arrays of shape (..., N); leading dims are flattened
    (mean over last dim, summed over everything else).
    """
    assert y_true.shape == y_pred.shape
    N = y_true.shape[-1]
    yt = y_true.reshape(-1, N)
    yp = y_pred.reshape(-1, N)
    B = yt.shape[0]

    Np = _round_up(N, 128)                 # lane-aligned spectrum length
    num_parallel = max(1, int(num_parallel))

    # Batch tile: fill the MXU M-dimension (up to 256), multiple of 8.
    if batch_tile is None:
        per_core = pl.cdiv(B, num_parallel)
        batch_tile = min(256, _round_up(per_core, 8))
    batch_tile = _round_up(max(int(batch_tile), 8), 8)

    tri_bytes = 2 if use_bf16 else 4

    def vmem_needed(bt):
        # tri (single-buffered scratch) + 2 inputs x 2 pipeline buffers + acc/out
        return Np * Np * tri_bytes + 2 * 2 * bt * Np * 4 + 4 * (8 * 128 * 4)

    # Shrink the batch tile if the resident footprint would get out of hand.
    while batch_tile > 8 and vmem_needed(batch_tile) > (80 << 20):
        batch_tile = _round_up(max(batch_tile // 2, 8), 8)

    steps = pl.cdiv(B, num_parallel * batch_tile)
    B_pad = num_parallel * steps * batch_tile

    # Zero padding: padded rows give d == 0 (zero contribution); padded
    # columns are masked inside the kernel via the triangular operator.
    yt = jnp.pad(yt, ((0, B_pad - B), (0, Np - N)))
    yp = jnp.pad(yp, ((0, B_pad - B), (0, Np - N)))

    compute_dtype = jnp.bfloat16 if use_bf16 else jnp.float32
    tri_dtype = jnp.bfloat16 if use_bf16 else jnp.float32

    kernel = functools.partial(
        _emd_kernel, n_true=N, bt=batch_tile, np_pad=Np,
        compute_dtype=compute_dtype)

    cost = pl.CostEstimate(
        flops=2 * B_pad * Np * Np + 3 * B_pad * Np,
        transcendentals=0,
        bytes_accessed=2 * B_pad * Np * 4 + 8 * 128 * num_parallel * 4,
    )

    vmem_limit = int(min(max(vmem_needed(batch_tile) + (8 << 20), 32 << 20),
                         100 << 20))

    out = pl.pallas_call(
        kernel,
        out_shape=jax.ShapeDtypeStruct((8, 128 * num_parallel), jnp.float32),
        grid_spec=pltpu.PrefetchScalarGridSpec(
            num_scalar_prefetch=0,
            grid=(num_parallel, steps),
            in_specs=[
                pl.BlockSpec((batch_tile, Np), lambda p, i: (p * steps + i, 0)),
                pl.BlockSpec((batch_tile, Np), lambda p, i: (p * steps + i, 0)),
            ],
            # Lane-dense per-core partial-sum slab; final reduce in the wrapper.
            out_specs=pl.BlockSpec((8, 128), lambda p, i: (0, p)),
            scratch_shapes=[
                pltpu.VMEM((Np, Np), tri_dtype),    # cumsum operator (in-kernel)
                pltpu.VMEM((8, 128), jnp.float32),  # vreg-shaped accumulator
            ],
        ),
        compiler_params=pltpu.CompilerParams(
            dimension_semantics=("parallel", "arbitrary"),
            vmem_limit_bytes=vmem_limit,
        ),
        cost_estimate=cost,
    )(yt, yp)

    loss = jnp.sum(out) * (1.0 / float(N))
    return loss.astype(jnp.result_type(y_true.dtype, y_pred.dtype))


def emd_loss_ref(y_true, y_pred):
    c = jnp.cumsum(y_true, axis=-1) - jnp.cumsum(y_pred, axis=-1)
    return jnp.sum(jnp.mean(jnp.square(c), axis=-1))


if __name__ == "__main__":
    key = jax.random.PRNGKey(0)
    k1, k2 = jax.random.split(key)

    # Small synthetic spectra batch; exercises both batch and length padding.
    B, N = 6, 200
    y_true = jax.random.uniform(k1, (B, N), dtype=jnp.float32)
    y_pred = jax.random.uniform(k2, (B, N), dtype=jnp.float32)

    loss = emd_loss(y_true, y_pred)
    jax.block_until_ready(loss)
    ref = emd_loss_ref(y_true, y_pred)
    assert jnp.allclose(loss, ref, rtol=1e-4, atol=1e-5), (loss, ref)

    # Multi-step accumulation path (several grid steps per core).
    B2, N2 = 40, 200
    yt2 = jax.random.uniform(k1, (B2, N2), dtype=jnp.float32)
    yp2 = jax.random.uniform(k2, (B2, N2), dtype=jnp.float32)
    loss2 = emd_loss(yt2, yp2, batch_tile=8)
    jax.block_until_ready(loss2)
    ref2 = emd_loss_ref(yt2, yp2)
    assert jnp.allclose(loss2, ref2, rtol=1e-4, atol=1e-5), (loss2, ref2)

    print("KERNEL_OK")
</pallas_src>

<mosaic_0001>
module attributes {stable_mosaic.version = 11 : i64} {
  func.func @_emd_kernel(%arg0: i32, %arg1: i32, %arg2: memref<8x256xf32, #tpu.memory_space<vmem>>, %arg3: memref<8x256xf32, #tpu.memory_space<vmem>>, %arg4: memref<8x128xf32, #tpu.memory_space<vmem>>, %arg5: memref<256x256xf32, #tpu.memory_space<vmem>>, %arg6: memref<8x128xf32, #tpu.memory_space<vmem>>) attributes {dimension_semantics = [#tpu.dimension_semantics<parallel>, #tpu.dimension_semantics<arbitrary>], iteration_bounds = array<i64: 2, 1>, scalar_prefetch = 0 : i64, scratch_operands = 2 : i64, tpu.core_type = #tpu.core_type<tc>, window_params = [{transform_indices = @transform_0, window_bounds = array<i64: 8, 256>}, {transform_indices = @transform_1, window_bounds = array<i64: 8, 256>}, {transform_indices = @transform_2, window_bounds = array<i64: 8, 128>}]} {
    %c0_i32 = arith.constant 0 : i32
    %0 = arith.cmpi eq, %arg1, %c0_i32 : i32
    %1 = arith.extui %0 : i1 to i32
    %c0_i32_0 = arith.constant 0 : i32
    %2 = arith.cmpi ne, %1, %c0_i32_0 : i32
    scf.if %2 {
      %cst_12 = arith.constant 0.000000e+00 : f32
      %18 = vector.broadcast %cst_12 : f32 to vector<8x128xf32>
      %c0_13 = arith.constant 0 : index
      %c0_14 = arith.constant 0 : index
      %19 = vector.load %arg6[%c0_13, %c0_14] : memref<8x128xf32, #tpu.memory_space<vmem>>, vector<8x128xf32>
      tpu.vector_store %arg6[%c0_13, %c0_14], %18 {strides = array<i32>} : memref<8x128xf32, #tpu.memory_space<vmem>>, vector<8x128xf32>,
      %20 = tpu.iota {dimensions = array<i32: 0>} : vector<256x256xi32>
      %21 = tpu.iota {dimensions = array<i32: 1>} : vector<256x256xi32>
      %22 = arith.cmpi sle, %20, %21 : vector<256x256xi32>
      %c200_i32 = arith.constant 200 : i32
      %23 = vector.broadcast %c200_i32 : i32 to vector<256x256xi32>
      %24 = arith.cmpi slt, %21, %23 : vector<256x256xi32>
      %25 = arith.andi %22, %24 : vector<256x256xi1>
      %26 = arith.extui %25 : vector<256x256xi1> to vector<256x256xi32>
      %27 = arith.sitofp %26 : vector<256x256xi32> to vector<256x256xf32>
      %c0_15 = arith.constant 0 : index
      %c0_16 = arith.constant 0 : index
      %28 = vector.load %arg5[%c0_15, %c0_16] : memref<256x256xf32, #tpu.memory_space<vmem>>, vector<256x256xf32>
      tpu.vector_store %arg5[%c0_15, %c0_16], %27 {strides = array<i32>} : memref<256x256xf32, #tpu.memory_space<vmem>>, vector<256x256xf32>,
    } else {
    }
    %c0 = arith.constant 0 : index
    %c0_1 = arith.constant 0 : index
    %3 = vector.load %arg2[%c0, %c0_1] : memref<8x256xf32, #tpu.memory_space<vmem>>, vector<8x256xf32>
    %c0_2 = arith.constant 0 : index
    %c0_3 = arith.constant 0 : index
    %4 = vector.load %arg3[%c0_2, %c0_3] : memref<8x256xf32, #tpu.memory_space<vmem>>, vector<8x256xf32>
    %5 = arith.subf %3, %4 : vector<8x256xf32>
    %c0_4 = arith.constant 0 : index
    %c0_5 = arith.constant 0 : index
    %6 = vector.load %arg5[%c0_4, %c0_5] : memref<256x256xf32, #tpu.memory_space<vmem>>, vector<256x256xf32>
    %cst = arith.constant dense<0.000000e+00> : vector<8x256xf32>
    %7 = tpu.matmul %5, %6, %cst {dimension_numbers = #tpu.dot_dimension_numbers<[1], [0], [0], [1], [0, 0, 1, 1], [], []>} : vector<8x256xf32>, vector<256x256xf32>, vector<8x256xf32> -> vector<8x256xf32>
    %8 = arith.mulf %7, %7 : vector<8x256xf32>
    %9 = vector.extract_strided_slice %8 {offsets = [0, 0], sizes = [8, 128], strides = [1, 1]} : vector<8x256xf32> to vector<8x128xf32>
    %10 = vector.extract_strided_slice %8 {offsets = [0, 128], sizes = [8, 128], strides = [1, 1]} : vector<8x256xf32> to vector<8x128xf32>
    %11 = arith.addf %9, %10 : vector<8x128xf32>
    %c0_6 = arith.constant 0 : index
    %c0_7 = arith.constant 0 : index
    %12 = vector.load %arg6[%c0_6, %c0_7] : memref<8x128xf32, #tpu.memory_space<vmem>>, vector<8x128xf32>
    %13 = arith.addf %12, %11 : vector<8x128xf32>
    %c0_8 = arith.constant 0 : index
    %c0_9 = arith.constant 0 : index
    %14 = vector.load %arg6[%c0_8, %c0_9] : memref<8x128xf32, #tpu.memory_space<vmem>>, vector<8x128xf32>
    tpu.vector_store %arg6[%c0_8, %c0_9], %13 {strides = array<i32>} : memref<8x128xf32, #tpu.memory_space<vmem>>, vector<8x128xf32>,
    %c0_i32_10 = arith.constant 0 : i32
    %15 = arith.cmpi eq, %arg1, %c0_i32_10 : i32
    %16 = arith.extui %15 : i1 to i32
    %c0_i32_11 = arith.constant 0 : i32
    %17 = arith.cmpi ne, %16, %c0_i32_11 : i32
    scf.if %17 {
      %c0_12 = arith.constant 0 : index
      %c0_13 = arith.constant 0 : index
      %18 = vector.load %arg6[%c0_12, %c0_13] : memref<8x128xf32, #tpu.memory_space<vmem>>, vector<8x128xf32>
      %c0_14 = arith.constant 0 : index
      %c0_15 = arith.constant 0 : index
      %19 = vector.load %arg4[%c0_14, %c0_15] : memref<8x128xf32, #tpu.memory_space<vmem>>, vector<8x128xf32>
      tpu.vector_store %arg4[%c0_14, %c0_15], %18 {strides = array<i32>} : memref<8x128xf32, #tpu.memory_space<vmem>>, vector<8x128xf32>,
    } else {
    }
    return
  }
  func.func @transform_0(%arg0: i32, %arg1: i32) -> (i32, i32) {
    %c1_i32 = arith.constant 1 : i32
    %0 = arith.muli %arg0, %c1_i32 : i32
    %1 = arith.addi %0, %arg1 : i32
    %c0_i32 = arith.constant 0 : i32
    %c0_i32_0 = arith.constant 0 : i32
    return %1, %c0_i32 : i32, i32
  }
  func.func @transform_1(%arg0: i32, %arg1: i32) -> (i32, i32) {
    %c1_i32 = arith.constant 1 : i32
    %0 = arith.muli %arg0, %c1_i32 : i32
    %1 = arith.addi %0, %arg1 : i32
    %c0_i32 = arith.constant 0 : i32
    %c0_i32_0 = arith.constant 0 : i32
    return %1, %c0_i32 : i32, i32
  }
  func.func @transform_2(%arg0: i32, %arg1: i32) -> (i32, i32) {
    %c0_i32 = arith.constant 0 : i32
    %c0_i32_0 = arith.constant 0 : i32
    return %c0_i32, %arg0 : i32, i32
  }
}

</mosaic_0001>

<llo_original>
// kernel: tpu_custom_call.1
$region0: #{tpu_custom_call.1}
  #allocation0 [shape = 'u32[]', space=smem, size = 0x4, offset = 0x4, fixed_abs, tag = 'smem constant byte address 0x4 - core index']
  #allocation1 [shape = 'u32[144,128]{1,0:T(1,128)}', space=vmem, size = 0x12000, scoped, tag = 'internal scratch']
  #allocation2 [shape = 'f32[256,256]{1,0:T(8,128)}', space=vmem, size = 0x40000, scoped, tag = 'scratch operand']
  #allocation3 [shape = 'f32[8,128]{1,0:T(8,128)}', space=vmem, size = 0x1000, scoped, tag = 'scratch operand']
  %s0 = inlined_call_operand.hbm [shape: f32[16,256], index: 0, kind: input, shape index: {}]
  %s1 = inlined_call_operand.hbm [shape: f32[16,256], index: 1, kind: input, shape index: {}]
  %s2 = inlined_call_operand.hbm [shape: f32[8,256], index: 2, kind: output, shape index: {}]
  %s3 = sld [smem:[#allocation0]]
  $region57: #{tpu_custom_call.1} parent=0
    _
  %s5 = ssub.s32 1, %s3
  %s6 = scalar_select 0, %s5, %s3
  $region1: #{tpu_custom_call.1} parent=0
    #allocation4 [shape = 'u8[16384]{0}', space=vmem, size = 0x4000, scoped, tag = 'input window, operand 0']
    #allocation5 [shape = 's32[2]{0}', space=sflag, size = 0x8, scoped, tag = 'scoped memory for tpu_custom_call.1']
    #allocation6 [shape = 's32[2]{0}', space=sflag, size = 0x8, scoped, tag = 'scoped memory for tpu_custom_call.1']
    #allocation7 [shape = 'u8[16384]{0}', space=vmem, size = 0x4000, scoped, tag = 'input window, operand 1']
    #allocation8 [shape = 's32[2]{0}', space=sflag, size = 0x8, scoped, tag = 'scoped memory for tpu_custom_call.1']
    #allocation9 [shape = 'u8[8192]{0}', space=vmem, size = 0x2000, scoped, tag = 'output window, operand 0']
    %7 = vsyncpa [#allocation5], 0
    %s8 = scalar_lea.sflag [#allocation5], 1
    %9 = vsyncpa %s8, 0
    %10 = vsyncpa [#allocation8], 0
    %s11 = scalar_lea.sflag [#allocation8], 1
    %12 = vsyncpa %s11, 0
    %13 = vsyncpa [#allocation6], 0
    %s14 = scalar_lea.sflag [#allocation6], 1
    %15 = vsyncpa %s14, 0
    loop: start=0, step=1, limit=4
    $region2: #{tpu_custom_call.1} parent=1 // loop_pre_header
      _
    $region3: #{tpu_custom_call.1} parent=1 // loop_header
      %s17 = sphi 0, %s21
      %p18 = scmp.ge.s32.totalorder %s17, 4
      %s24 = sphi 0, %s36
      %s25 = sphi 0, %s32
      %s26 = sphi 0, %s24
      %s27 = sphi 0, %s25
      %s28 = sphi 0, %s26
      %s29 = sphi 0, %s27
      %s41 = sphi 0, %s43
      %s44 = sphi 0, %s41
      %s45 = sphi 0, %s44
      %s61 = sphi 0, %s45
      %s69 = sphi 0, %s71
      %s72 = sphi 0, %s69
      %s73 = sphi 0, %s72
      %s89 = sphi 0, %s73
      %s95 = sphi 0, %s97
      %s98 = sphi 0, %s95
      %s99 = sphi 0, %s98
      %s115 = sphi 0, %s99
    $region4: #{tpu_custom_call.1} parent=1 // loop_header_branch
      %20 = sbr.rel (%p18) target = $region8
    $region5: #{tpu_custom_call.1} parent=1 // loop_body
      %s22 = ssub.s32 %s17, 1
      %s23 = ssub.s32 %s17, 2
      %s30 = sadd.s32 1, %s25
      %p31 = scmp.ge.s32.totalorder %s30, 1
      %s32 = scalar_select %p31, 0, %s30
      %s33 = sadd.s32 1, %s24
      %s34 = scalar_select %p31, %s33, %s24
      %p35 = scmp.ge.s32.totalorder %s34, 2
      %s36 = scalar_select %p35, 0, %s34
      %s37 = sadd.s32 %s24, %s25
      %s38 = sadd.s32 %s36, %s32
      %s39 = ssub.s32 %s37, %s38
      %p40 = scmp.eq.s32.totalorder %s39, 0
      %s42 = sadd.s32 %s41, 1
      %s43 = scalar_select %p40, %s41, %s42
      %p46 = pneg %p40
      %p47 = scmp.eq.s32.totalorder %s17, 1
      %p48 = por %p46, %p47
      %p49 = scmp.ne.s32.totalorder %s41, %s44
      %p50 = scmp.eq.s32.totalorder %s17, 0
      %p51 = por %p49, %p50
      %p52 = scmp.ne.s32.totalorder %s41, %s44
      %p53 = scmp.eq.s32.totalorder %s22, 1
      %p54 = por %p52, %p53
      %p55 = scmp.ne.s32.totalorder %s44, %s45
      %p56 = scmp.eq.s32.totalorder %s22, 0
      %p57 = por %p55, %p56
      %p58 = scmp.ne.s32.totalorder %s44, %s45
      %p59 = scmp.eq.s32.totalorder %s23, 1
      %p60 = por %p58, %p59
      %p62 = scmp.ne.s32.totalorder %s45, %s61
      %p63 = scmp.eq.s32.totalorder %s23, 0
      %p64 = por %p62, %p63
      %s65 = sadd.s32 %s24, %s25
      %s66 = sadd.s32 %s36, %s32
      %s67 = ssub.s32 %s65, %s66
      %p68 = scmp.eq.s32.totalorder %s67, 0
      %s70 = sadd.s32 %s69, 1
      %s71 = scalar_select %p68, %s69, %s70
      %p74 = pneg %p68
      %p75 = scmp.eq.s32.totalorder %s17, 1
      %p76 = por %p74, %p75
      %p77 = scmp.ne.s32.totalorder %s69, %s72
      %p78 = scmp.eq.s32.totalorder %s17, 0
      %p79 = por %p77, %p78
      %p80 = scmp.ne.s32.totalorder %s69, %s72
      %p81 = scmp.eq.s32.totalorder %s22, 1
      %p82 = por %p80, %p81
      %p83 = scmp.ne.s32.totalorder %s72, %s73
      %p84 = scmp.eq.s32.totalorder %s22, 0
      %p85 = por %p83, %p84
      %p86 = scmp.ne.s32.totalorder %s72, %s73
      %p87 = scmp.eq.s32.totalorder %s23, 1
      %p88 = por %p86, %p87
      %p90 = scmp.ne.s32.totalorder %s73, %s89
      %p91 = scmp.eq.s32.totalorder %s23, 0
      %p92 = por %p90, %p91
      %s93 = ssub.s32 %s24, %s36
      %p94 = scmp.eq.s32.totalorder %s93, 0
      %s96 = sadd.s32 %s95, 1
      %s97 = scalar_select %p94, %s95, %s96
      %p100 = pneg %p94
      %p101 = scmp.eq.s32.totalorder %s17, 1
      %p102 = por %p100, %p101
      %p103 = scmp.ne.s32.totalorder %s95, %s98
      %p104 = scmp.eq.s32.totalorder %s17, 0
      %p105 = por %p103, %p104
      %p106 = scmp.ne.s32.totalorder %s95, %s98
      %p107 = scmp.eq.s32.totalorder %s22, 1
      %p108 = por %p106, %p107
      %p109 = scmp.ne.s32.totalorder %s98, %s99
      %p110 = scmp.eq.s32.totalorder %s22, 0
      %p111 = por %p109, %p110
      %p112 = scmp.ne.s32.totalorder %s98, %s99
      %p113 = scmp.eq.s32.totalorder %s23, 1
      %p114 = por %p112, %p113
      %p116 = scmp.ne.s32.totalorder %s99, %s115
      %p117 = scmp.eq.s32.totalorder %s23, 0
      %p118 = por %p116, %p117
      %p119 = scmp.le.s32.totalorder 1, %s17
      %p120 = scmp.lt.s32.totalorder %s17, 3
      %p121 = pnand %p119, %p120
      %p122 = pneg %p121
      // Predicated region
      $region9: #{tpu_custom_call.1} parent=5 // pred_check
        _
      $region10: #{tpu_custom_call.1} parent=5 // pred_check_branch
        %124 = sbr.rel (%p121) target = $region12
      $region11: #{tpu_custom_call.1} parent=5 // pred_region
        %s125 = ssub.s32 %s17, 1
      $region12: #{tpu_custom_call.1} parent=5 // pred_fallthru
        _
      %p126 = scmp.lt.s32.totalorder %s17, 2
      // Predicated region
      $region13: #{tpu_custom_call.1} parent=5 // pred_check
        %p127 = pneg %p126
      $region14: #{tpu_custom_call.1} parent=5 // pred_check_branch
        %129 = sbr.rel (%p127) target = $region16
      $region15: #{tpu_custom_call.1} parent=5 // pred_region
        // Predicated region
        $region17: #{tpu_custom_call.1} parent=15 // pred_check
          %p130 = pneg %p51
        $region18: #{tpu_custom_call.1} parent=15 // pred_check_branch
          %132 = sbr.rel (%p130) target = $region20
        $region19: #{tpu_custom_call.1} parent=15 // pred_region
          %s133 = sand.u32 %s41, 1
          %s134 = scalar_lea.sflag [#allocation5], %s133
          %s135 = sand.u32 %s41, 1
          %s136 = smul.addr %s135, 16
          %s137 = scalar_lea.vmem [#allocation4], %s136
          %s138 = sadd.s32 %s24, %s25
          %s140 = ssub.s32 256, 256
          %141 = vsyncadd %s134, %s140
          %s142 = smul.addr %s138, 2
          %s143 = smul.addr %s142, 128
          %s144 = scalar_lea.hbm %s0, %s143
          %s146 = sshll.u32 %s137, 4
          %s147 = int_to_ptr.vmem [resolvable:$true] %s146
          %149 = dma.hbm_to_vmem [thread:$0]  %s144, 256, %s147, %s134
        $region20: #{tpu_custom_call.1} parent=15 // pred_fallthru
          _
        // Predicated region
        $region21: #{tpu_custom_call.1} parent=15 // pred_check
          %p150 = pneg %p79
        $region22: #{tpu_custom_call.1} parent=15 // pred_check_branch
          %152 = sbr.rel (%p150) target = $region24
        $region23: #{tpu_custom_call.1} parent=15 // pred_region
          %s153 = sand.u32 %s69, 1
          %s154 = scalar_lea.sflag [#allocation8], %s153
          %s155 = sand.u32 %s69, 1
          %s156 = smul.addr %s155, 16
          %s157 = scalar_lea.vmem [#allocation7], %s156
          %s158 = sadd.s32 %s24, %s25
          %s160 = ssub.s32 256, 256
          %161 = vsyncadd %s154, %s160
          %s162 = smul.addr %s158, 2
          %s163 = smul.addr %s162, 128
          %s164 = scalar_lea.hbm %s1, %s163
          %s166 = sshll.u32 %s157, 4
          %s167 = int_to_ptr.vmem [resolvable:$true] %s166
          %169 = dma.hbm_to_vmem [thread:$0]  %s164, 256, %s167, %s154
        $region24: #{tpu_custom_call.1} parent=15 // pred_fallthru
          _
      $region16: #{tpu_custom_call.1} parent=5 // pred_fallthru
        _
      %p170 = scmp.le.s32.totalorder 1, %s17
      %p171 = scmp.lt.s32.totalorder %s17, 3
      %p172 = pnand %p170, %p171
      %p173 = pneg %p172
      // Predicated region
      $region25: #{tpu_custom_call.1} parent=5 // pred_check
        _
      $region26: #{tpu_custom_call.1} parent=5 // pred_check_branch
        %175 = sbr.rel (%p172) target = $region28
      $region27: #{tpu_custom_call.1} parent=5 // pred_region
        %s176 = ssub.s32 %s17, 1
        %s177 = sand.u32 %s44, 1
        %s178 = scalar_lea.sflag [#allocation5], %s177
        %s179 = sand.u32 %s44, 1
        %s180 = smul.addr %s179, 16
        %s181 = scalar_lea.vmem [#allocation4], %s180
        // Predicated region
        $region29: #{tpu_custom_call.1} parent=27 // pred_check
          %p182 = pneg %p57
        $region30: #{tpu_custom_call.1} parent=27 // pred_check_branch
          %184 = sbr.rel (%p182) target = $region32
        $region31: #{tpu_custom_call.1} parent=27 // pred_region
          %185 = dma.done %s178, 256
        $region32: #{tpu_custom_call.1} parent=27 // pred_fallthru
          _
        %s186 = sand.u32 %s72, 1
        %s187 = scalar_lea.sflag [#allocation8], %s186
        %s188 = sand.u32 %s72, 1
        %s189 = smul.addr %s188, 16
        %s190 = scalar_lea.vmem [#allocation7], %s189
        // Predicated region
        $region33: #{tpu_custom_call.1} parent=27 // pred_check
          %p191 = pneg %p85
        $region34: #{tpu_custom_call.1} parent=27 // pred_check_branch
          %193 = sbr.rel (%p191) target = $region36
        $region35: #{tpu_custom_call.1} parent=27 // pred_region
          %194 = dma.done %s187, 256
        $region36: #{tpu_custom_call.1} parent=27 // pred_fallthru
          _
        %s195 = sand.u32 %s44, 1
        %s196 = scalar_lea.sflag [#allocation5], %s195
        %s197 = sand.u32 %s44, 1
        %s198 = smul.addr %s197, 16
        %s199 = scalar_lea.vmem [#allocation4], %s198
        %p200 = pneg %p57
        %p201 = pneg %p54
        %s202 = sand.u32 %s72, 1
        %s203 = scalar_lea.sflag [#allocation8], %s202
        %s204 = sand.u32 %s72, 1
        %s205 = smul.addr %s204, 16
        %s206 = scalar_lea.vmem [#allocation7], %s205
        %p207 = pneg %p85
        %p208 = pneg %p82
        %p209 = pneg %p111
        %p210 = pneg %p108
        %s211 = sand.u32 %s98, 1
        %s212 = scalar_lea.sflag [#allocation6], %s211
        %s213 = sand.u32 %s98, 1
        %s214 = smul.addr %s213, 8
        %s215 = scalar_lea.vmem [#allocation9], %s214
        %s216 = sadd.s32 %s26, %s27
        %s217 = sadd.s32 %s26, %s27
        %p218 = scmp.eq.s32.totalorder %s27, 0
        // Predicated region
        $region37: #{tpu_custom_call.1} parent=27 // pred_check
          %p219 = pneg %p218
        $region38: #{tpu_custom_call.1} parent=27 // pred_check_branch
          %221 = sbr.rel (%p219) target = $region40
        $region39: #{tpu_custom_call.1} parent=27 // pred_region
          %222 = vst [vmem:[#allocation3] sm:$0xff] 0.0
          %v223 = vlaneseq
          %v224 = vshrl.u32 %v223, 7
          %v225 = vadd.s32 %v224, 8
          %v226 = vadd.s32 %v224, 16
          %v227 = vadd.s32 %v224, 24
          %v228 = vadd.s32 %v224, 32
          %v229 = vadd.s32 %v224, 40
          %v230 = vadd.s32 %v224, 48
          %v231 = vadd.s32 %v224, 56
          %v232 = vadd.s32 %v224, 64
          %v233 = vadd.s32 %v224, 72
          %v234 = vadd.s32 %v224, 80
          %v235 = vadd.s32 %v224, 88
          %v236 = vadd.s32 %v224, 96
          %v237 = vadd.s32 %v224, 104
          %v238 = vadd.s32 %v224, 112
          %v239 = vadd.s32 %v224, 120
          %v240 = vadd.s32 %v224, 128
          %v241 = vadd.s32 %v224, 136
          %v242 = vadd.s32 %v224, 144
          %v243 = vadd.s32 %v224, 152
          %v244 = vadd.s32 %v224, 160
          %v245 = vadd.s32 %v224, 168
          %v246 = vadd.s32 %v224, 176
          %v247 = vadd.s32 %v224, 184
          %v248 = vadd.s32 %v224, 192
          %v249 = vadd.s32 %v224, 200
          %v250 = vadd.s32 %v224, 208
          %v251 = vadd.s32 %v224, 216
          %v252 = vadd.s32 %v224, 224
          %v253 = vadd.s32 %v224, 232
          %v254 = vadd.s32 %v224, 240
          %v255 = vadd.s32 %v224, 248
          %v256 = vlaneseq
          %v257 = vand.u32 %v256, 127
          %v258 = vadd.s32 %v257, 128
          %vm259 = vcmp.le.s32.totalorder %v224, %v257
          %vm260 = vcmp.le.s32.totalorder %v224, %v258
          %vm261 = vcmp.le.s32.totalorder %v225, %v257
          %vm262 = vcmp.le.s32.totalorder %v225, %v258
          %vm263 = vcmp.le.s32.totalorder %v226, %v257
          %vm264 = vcmp.le.s32.totalorder %v226, %v258
          %vm265 = vcmp.le.s32.totalorder %v227, %v257
          %vm266 = vcmp.le.s32.totalorder %v227, %v258
          %vm267 = vcmp.le.s32.totalorder %v228, %v257
          %vm268 = vcmp.le.s32.totalorder %v228, %v258
          %vm269 = vcmp.le.s32.totalorder %v229, %v257
          %vm270 = vcmp.le.s32.totalorder %v229, %v258
          %vm271 = vcmp.le.s32.totalorder %v230, %v257
          %vm272 = vcmp.le.s32.totalorder %v230, %v258
          %vm273 = vcmp.le.s32.totalorder %v231, %v257
          %vm274 = vcmp.le.s32.totalorder %v231, %v258
          %vm275 = vcmp.le.s32.totalorder %v232, %v257
          %vm276 = vcmp.le.s32.totalorder %v232, %v258
          %vm277 = vcmp.le.s32.totalorder %v233, %v257
          %vm278 = vcmp.le.s32.totalorder %v233, %v258
          %vm279 = vcmp.le.s32.totalorder %v234, %v257
          %vm280 = vcmp.le.s32.totalorder %v234, %v258
          %vm281 = vcmp.le.s32.totalorder %v235, %v257
          %vm282 = vcmp.le.s32.totalorder %v235, %v258
          %vm283 = vcmp.le.s32.totalorder %v236, %v257
          %vm284 = vcmp.le.s32.totalorder %v236, %v258
          %vm285 = vcmp.le.s32.totalorder %v237, %v257
          %vm286 = vcmp.le.s32.totalorder %v237, %v258
          %vm287 = vcmp.le.s32.totalorder %v238, %v257
          %vm288 = vcmp.le.s32.totalorder %v238, %v258
          %vm289 = vcmp.le.s32.totalorder %v239, %v257
          %vm290 = vcmp.le.s32.totalorder %v239, %v258
          %vm291 = vcmp.le.s32.totalorder %v240, %v257
          %vm292 = vcmp.le.s32.totalorder %v240, %v258
          %vm293 = vcmp.le.s32.totalorder %v241, %v257
          %vm294 = vcmp.le.s32.totalorder %v241, %v258
          %vm295 = vcmp.le.s32.totalorder %v242, %v257
          %vm296 = vcmp.le.s32.totalorder %v242, %v258
          %vm297 = vcmp.le.s32.totalorder %v243, %v257
          %vm298 = vcmp.le.s32.totalorder %v243, %v258
          %vm299 = vcmp.le.s32.totalorder %v244, %v257
          %vm300 = vcmp.le.s32.totalorder %v244, %v258
          %vm301 = vcmp.le.s32.totalorder %v245, %v257
          %vm302 = vcmp.le.s32.totalorder %v245, %v258
          %vm303 = vcmp.le.s32.totalorder %v246, %v257
          %vm304 = vcmp.le.s32.totalorder %v246, %v258
          %vm305 = vcmp.le.s32.totalorder %v247, %v257
          %vm306 = vcmp.le.s32.totalorder %v247, %v258
          %vm307 = vcmp.le.s32.totalorder %v248, %v257
          %vm308 = vcmp.le.s32.totalorder %v248, %v258
          %vm309 = vcmp.le.s32.totalorder %v249, %v257
          %vm310 = vcmp.le.s32.totalorder %v249, %v258
          %vm311 = vcmp.le.s32.totalorder %v250, %v257
          %vm312 = vcmp.le.s32.totalorder %v250, %v258
          %vm313 = vcmp.le.s32.totalorder %v251, %v257
          %vm314 = vcmp.le.s32.totalorder %v251, %v258
          %vm315 = vcmp.le.s32.totalorder %v252, %v257
          %vm316 = vcmp.le.s32.totalorder %v252, %v258
          %vm317 = vcmp.le.s32.totalorder %v253, %v257
          %vm318 = vcmp.le.s32.totalorder %v253, %v258
          %vm319 = vcmp.le.s32.totalorder %v254, %v257
          %vm320 = vcmp.le.s32.totalorder %v254, %v258
          %vm321 = vcmp.le.s32.totalorder %v255, %v257
          %vm322 = vcmp.le.s32.totalorder %v255, %v258
          %vm323 = vcmp.lt.s32.totalorder %v257, 200
          %vm324 = vcmp.lt.s32.totalorder %v258, 200
          %vm325 = vmand %vm259, %vm323
          %vm326 = vmand %vm260, %vm324
          %vm327 = vmand %vm261, %vm323
          %vm328 = vmand %vm262, %vm324
          %vm329 = vmand %vm263, %vm323
          %vm330 = vmand %vm264, %vm324
          %vm331 = vmand %vm265, %vm323
          %vm332 = vmand %vm266, %vm324
          %vm333 = vmand %vm267, %vm323
          %vm334 = vmand %vm268, %vm324
          %vm335 = vmand %vm269, %vm323
          %vm336 = vmand %vm270, %vm324
          %vm337 = vmand %vm271, %vm323
          %vm338 = vmand %vm272, %vm324
          %vm339 = vmand %vm273, %vm323
          %vm340 = vmand %vm274, %vm324
          %vm341 = vmand %vm275, %vm323
          %vm342 = vmand %vm276, %vm324
          %vm343 = vmand %vm277, %vm323
          %vm344 = vmand %vm278, %vm324
          %vm345 = vmand %vm279, %vm323
          %vm346 = vmand %vm280, %vm324
          %vm347 = vmand %vm281, %vm323
          %vm348 = vmand %vm282, %vm324
          %vm349 = vmand %vm283, %vm323
          %vm350 = vmand %vm284, %vm324
          %vm351 = vmand %vm285, %vm323
          %vm352 = vmand %vm286, %vm324
          %vm353 = vmand %vm287, %vm323
          %vm354 = vmand %vm288, %vm324
          %vm355 = vmand %vm289, %vm323
          %vm356 = vmand %vm290, %vm324
          %vm357 = vmand %vm291, %vm323
          %vm358 = vmand %vm292, %vm324
          %vm359 = vmand %vm293, %vm323
          %vm360 = vmand %vm294, %vm324
          %vm361 = vmand %vm295, %vm323
          %vm362 = vmand %vm296, %vm324
          %vm363 = vmand %vm297, %vm323
          %vm364 = vmand %vm298, %vm324
          %vm365 = vmand %vm299, %vm323
          %vm366 = vmand %vm300, %vm324
          %vm367 = vmand %vm301, %vm323
          %vm368 = vmand %vm302, %vm324
          %vm369 = vmand %vm303, %vm323
          %vm370 = vmand %vm304, %vm324
          %vm371 = vmand %vm305, %vm323
          %vm372 = vmand %vm306, %vm324
          %vm373 = vmand %vm307, %vm323
          %vm374 = vmand %vm308, %vm324
          %vm375 = vmand %vm309, %vm323
          %vm376 = vmand %vm310, %vm324
          %vm377 = vmand %vm311, %vm323
          %vm378 = vmand %vm312, %vm324
          %vm379 = vmand %vm313, %vm323
          %vm380 = vmand %vm314, %vm324
          %vm381 = vmand %vm315, %vm323
          %vm382 = vmand %vm316, %vm324
          %vm383 = vmand %vm317, %vm323
          %vm384 = vmand %vm318, %vm324
          %vm385 = vmand %vm319, %vm323
          %vm386 = vmand %vm320, %vm324
          %vm387 = vmand %vm321, %vm323
          %vm388 = vmand %vm322, %vm324
          %v389 = vsel %vm325, 1, 0
          %v390 = vsel %vm326, 1, 0
          %v391 = vsel %vm327, 1, 0
          %v392 = vsel %vm328, 1, 0
          %v393 = vsel %vm329, 1, 0
          %v394 = vsel %vm330, 1, 0
          %v395 = vsel %vm331, 1, 0
          %v396 = vsel %vm332, 1, 0
          %v397 = vsel %vm333, 1, 0
          %v398 = vsel %vm334, 1, 0
          %v399 = vsel %vm335, 1, 0
          %v400 = vsel %vm336, 1, 0
          %v401 = vsel %vm337, 1, 0
          %v402 = vsel %vm338, 1, 0
          %v403 = vsel %vm339, 1, 0
          %v404 = vsel %vm340, 1, 0
          %v405 = vsel %vm341, 1, 0
          %v406 = vsel %vm342, 1, 0
          %v407 = vsel %vm343, 1, 0
          %v408 = vsel %vm344, 1, 0
          %v409 = vsel %vm345, 1, 0
          %v410 = vsel %vm346, 1, 0
          %v411 = vsel %vm347, 1, 0
          %v412 = vsel %vm348, 1, 0
          %v413 = vsel %vm349, 1, 0
          %v414 = vsel %vm350, 1, 0
          %v415 = vsel %vm351, 1, 0
          %v416 = vsel %vm352, 1, 0
          %v417 = vsel %vm353, 1, 0
          %v418 = vsel %vm354, 1, 0
          %v419 = vsel %vm355, 1, 0
          %v420 = vsel %vm356, 1, 0
          %v421 = vsel %vm357, 1, 0
          %v422 = vsel %vm358, 1, 0
          %v423 = vsel %vm359, 1, 0
          %v424 = vsel %vm360, 1, 0
          %v425 = vsel %vm361, 1, 0
          %v426 = vsel %vm362, 1, 0
          %v427 = vsel %vm363, 1, 0
          %v428 = vsel %vm364, 1, 0
          %v429 = vsel %vm365, 1, 0
          %v430 = vsel %vm366, 1, 0
          %v431 = vsel %vm367, 1, 0
          %v432 = vsel %vm368, 1, 0
          %v433 = vsel %vm369, 1, 0
          %v434 = vsel %vm370, 1, 0
          %v435 = vsel %vm371, 1, 0
          %v436 = vsel %vm372, 1, 0
          %v437 = vsel %vm373, 1, 0
          %v438 = vsel %vm374, 1, 0
          %v439 = vsel %vm375, 1, 0
          %v440 = vsel %vm376, 1, 0
          %v441 = vsel %vm377, 1, 0
          %v442 = vsel %vm378, 1, 0
          %v443 = vsel %vm379, 1, 0
          %v444 = vsel %vm380, 1, 0
          %v445 = vsel %vm381, 1, 0
          %v446 = vsel %vm382, 1, 0
          %v447 = vsel %vm383, 1, 0
          %v448 = vsel %vm384, 1, 0
          %v449 = vsel %vm385, 1, 0
          %v450 = vsel %vm386, 1, 0
          %v451 = vsel %vm387, 1, 0
          %v452 = vsel %vm388, 1, 0
          %v453 = vcvt.s32.f32 %v389
          %v454 = vcvt.s32.f32 %v390
          %v455 = vcvt.s32.f32 %v391
          %v456 = vcvt.s32.f32 %v392
          %v457 = vcvt.s32.f32 %v393
          %v458 = vcvt.s32.f32 %v394
          %v459 = vcvt.s32.f32 %v395
          %v460 = vcvt.s32.f32 %v396
          %v461 = vcvt.s32.f32 %v397
          %v462 = vcvt.s32.f32 %v398
          %v463 = vcvt.s32.f32 %v399
          %v464 = vcvt.s32.f32 %v400
          %v465 = vcvt.s32.f32 %v401
          %v466 = vcvt.s32.f32 %v402
          %v467 = vcvt.s32.f32 %v403
          %v468 = vcvt.s32.f32 %v404
          %v469 = vcvt.s32.f32 %v405
          %v470 = vcvt.s32.f32 %v406
          %v471 = vcvt.s32.f32 %v407
          %v472 = vcvt.s32.f32 %v408
          %v473 = vcvt.s32.f32 %v409
          %v474 = vcvt.s32.f32 %v410
          %v475 = vcvt.s32.f32 %v411
          %v476 = vcvt.s32.f32 %v412
          %v477 = vcvt.s32.f32 %v413
          %v478 = vcvt.s32.f32 %v414
          %v479 = vcvt.s32.f32 %v415
          %v480 = vcvt.s32.f32 %v416
          %v481 = vcvt.s32.f32 %v417
          %v482 = vcvt.s32.f32 %v418
          %v483 = vcvt.s32.f32 %v419
          %v484 = vcvt.s32.f32 %v420
          %v485 = vcvt.s32.f32 %v421
          %v486 = vcvt.s32.f32 %v422
          %v487 = vcvt.s32.f32 %v423
          %v488 = vcvt.s32.f32 %v424
          %v489 = vcvt.s32.f32 %v425
          %v490 = vcvt.s32.f32 %v426
          %v491 = vcvt.s32.f32 %v427
          %v492 = vcvt.s32.f32 %v428
          %v493 = vcvt.s32.f32 %v429
          %v494 = vcvt.s32.f32 %v430
          %v495 = vcvt.s32.f32 %v431
          %v496 = vcvt.s32.f32 %v432
          %v497 = vcvt.s32.f32 %v433
          %v498 = vcvt.s32.f32 %v434
          %v499 = vcvt.s32.f32 %v435
          %v500 = vcvt.s32.f32 %v436
          %v501 = vcvt.s32.f32 %v437
          %v502 = vcvt.s32.f32 %v438
          %v503 = vcvt.s32.f32 %v439
          %v504 = vcvt.s32.f32 %v440
          %v505 = vcvt.s32.f32 %v441
          %v506 = vcvt.s32.f32 %v442
          %v507 = vcvt.s32.f32 %v443
          %v508 = vcvt.s32.f32 %v444
          %v509 = vcvt.s32.f32 %v445
          %v510 = vcvt.s32.f32 %v446
          %v511 = vcvt.s32.f32 %v447
          %v512 = vcvt.s32.f32 %v448
          %v513 = vcvt.s32.f32 %v449
          %v514 = vcvt.s32.f32 %v450
          %v515 = vcvt.s32.f32 %v451
          %v516 = vcvt.s32.f32 %v452
          %517 = vst [vmem:[#allocation2] sm:$0xff] %v453
          %518 = vst [vmem:[#allocation2 + $0x8] sm:$0xff] %v454
          %519 = vst [vmem:[#allocation2 + $0x10] sm:$0xff] %v455
          %520 = vst [vmem:[#allocation2 + $0x18] sm:$0xff] %v456
          %521 = vst [vmem:[#allocation2 + $0x20] sm:$0xff] %v457
          %522 = vst [vmem:[#allocation2 + $0x28] sm:$0xff] %v458
          %523 = vst [vmem:[#allocation2 + $0x30] sm:$0xff] %v459
          %524 = vst [vmem:[#allocation2 + $0x38] sm:$0xff] %v460
          %525 = vst [vmem:[#allocation2 + $0x40] sm:$0xff] %v461
          %526 = vst [vmem:[#allocation2 + $0x48] sm:$0xff] %v462
          %527 = vst [vmem:[#allocation2 + $0x50] sm:$0xff] %v463
          %528 = vst [vmem:[#allocation2 + $0x58] sm:$0xff] %v464
          %529 = vst [vmem:[#allocation2 + $0x60] sm:$0xff] %v465
          %530 = vst [vmem:[#allocation2 + $0x68] sm:$0xff] %v466
          %531 = vst [vmem:[#allocation2 + $0x70] sm:$0xff] %v467
          %532 = vst [vmem:[#allocation2 + $0x78] sm:$0xff] %v468
          %533 = vst [vmem:[#allocation2 + $0x80] sm:$0xff] %v469
          %534 = vst [vmem:[#allocation2 + $0x88] sm:$0xff] %v470
          %535 = vst [vmem:[#allocation2 + $0x90] sm:$0xff] %v471
          %536 = vst [vmem:[#allocation2 + $0x98] sm:$0xff] %v472
          %537 = vst [vmem:[#allocation2 + $0xa0] sm:$0xff] %v473
          %538 = vst [vmem:[#allocation2 + $0xa8] sm:$0xff] %v474
          %539 = vst [vmem:[#allocation2 + $0xb0] sm:$0xff] %v475
          %540 = vst [vmem:[#allocation2 + $0xb8] sm:$0xff] %v476
          %541 = vst [vmem:[#allocation2 + $0xc0] sm:$0xff] %v477
          %542 = vst [vmem:[#allocation2 + $0xc8] sm:$0xff] %v478
          %543 = vst [vmem:[#allocation2 + $0xd0] sm:$0xff] %v479
          %544 = vst [vmem:[#allocation2 + $0xd8] sm:$0xff] %v480
          %545 = vst [vmem:[#allocation2 + $0xe0] sm:$0xff] %v481
          %546 = vst [vmem:[#allocation2 + $0xe8] sm:$0xff] %v482
          %547 = vst [vmem:[#allocation2 + $0xf0] sm:$0xff] %v483
          %548 = vst [vmem:[#allocation2 + $0xf8] sm:$0xff] %v484
          %549 = vst [vmem:[#allocation2 + $0x100] sm:$0xff] %v485
          %550 = vst [vmem:[#allocation2 + $0x108] sm:$0xff] %v486
          %551 = vst [vmem:[#allocation2 + $0x110] sm:$0xff] %v487
          %552 = vst [vmem:[#allocation2 + $0x118] sm:$0xff] %v488
          %553 = vst [vmem:[#allocation2 + $0x120] sm:$0xff] %v489
          %554 = vst [vmem:[#allocation2 + $0x128] sm:$0xff] %v490
          %555 = vst [vmem:[#allocation2 + $0x130] sm:$0xff] %v491
          %556 = vst [vmem:[#allocation2 + $0x138] sm:$0xff] %v492
          %557 = vst [vmem:[#allocation2 + $0x140] sm:$0xff] %v493
          %558 = vst [vmem:[#allocation2 + $0x148] sm:$0xff] %v494
          %559 = vst [vmem:[#allocation2 + $0x150] sm:$0xff] %v495
          %560 = vst [vmem:[#allocation2 + $0x158] sm:$0xff] %v496
          %561 = vst [vmem:[#allocation2 + $0x160] sm:$0xff] %v497
          %562 = vst [vmem:[#allocation2 + $0x168] sm:$0xff] %v498
          %563 = vst [vmem:[#allocation2 + $0x170] sm:$0xff] %v499
          %564 = vst [vmem:[#allocation2 + $0x178] sm:$0xff] %v500
          %565 = vst [vmem:[#allocation2 + $0x180] sm:$0xff] %v501
          %566 = vst [vmem:[#allocation2 + $0x188] sm:$0xff] %v502
          %567 = vst [vmem:[#allocation2 + $0x190] sm:$0xff] %v503
          %568 = vst [vmem:[#allocation2 + $0x198] sm:$0xff] %v504
          %569 = vst [vmem:[#allocation2 + $0x1a0] sm:$0xff] %v505
          %570 = vst [vmem:[#allocation2 + $0x1a8] sm:$0xff] %v506
          %571 = vst [vmem:[#allocation2 + $0x1b0] sm:$0xff] %v507
          %572 = vst [vmem:[#allocation2 + $0x1b8] sm:$0xff] %v508
          %573 = vst [vmem:[#allocation2 + $0x1c0] sm:$0xff] %v509
          %574 = vst [vmem:[#allocation2 + $0x1c8] sm:$0xff] %v510
          %575 = vst [vmem:[#allocation2 + $0x1d0] sm:$0xff] %v511
          %576 = vst [vmem:[#allocation2 + $0x1d8] sm:$0xff] %v512
          %577 = vst [vmem:[#allocation2 + $0x1e0] sm:$0xff] %v513
          %578 = vst [vmem:[#allocation2 + $0x1e8] sm:$0xff] %v514
          %579 = vst [vmem:[#allocation2 + $0x1f0] sm:$0xff] %v515
          %580 = vst [vmem:[#allocation2 + $0x1f8] sm:$0xff] %v516
        $region40: #{tpu_custom_call.1} parent=27 // pred_fallthru
          _
        %v581 = vld [vmem:[%s181] sm:$0xff]
        %v582 = vld [vmem:[%s181 + $0x8] sm:$0xff]
        %v583 = vld [vmem:[%s190] sm:$0xff]
        %v584 = vld [vmem:[%s190 + $0x8] sm:$0xff]
        %v585 = vsub.f32 %v581, %v583
        %v586 = vsub.f32 %v582, %v584
        %v587 = vld [vmem:[#allocation2] sm:$0xff]
        %v588 = vld [vmem:[#allocation2 + $0x8] sm:$0xff]
        %v589 = vld [vmem:[#allocation2 + $0x10] sm:$0xff]
        %v590 = vld [vmem:[#allocation2 + $0x18] sm:$0xff]
        %v591 = vld [vmem:[#allocation2 + $0x20] sm:$0xff]
        %v592 = vld [vmem:[#allocation2 + $0x28] sm:$0xff]
        %v593 = vld [vmem:[#allocation2 + $0x30] sm:$0xff]
        %v594 = vld [vmem:[#allocation2 + $0x38] sm:$0xff]
        %v595 = vld [vmem:[#allocation2 + $0x40] sm:$0xff]
        %v596 = vld [vmem:[#allocation2 + $0x48] sm:$0xff]
        %v597 = vld [vmem:[#allocation2 + $0x50] sm:$0xff]
        %v598 = vld [vmem:[#allocation2 + $0x58] sm:$0xff]
        %v599 = vld [vmem:[#allocation2 + $0x60] sm:$0xff]
        %v600 = vld [vmem:[#allocation2 + $0x68] sm:$0xff]
        %v601 = vld [vmem:[#allocation2 + $0x70] sm:$0xff]
        %v602 = vld [vmem:[#allocation2 + $0x78] sm:$0xff]
        %v603 = vld [vmem:[#allocation2 + $0x80] sm:$0xff]
        %v604 = vld [vmem:[#allocation2 + $0x88] sm:$0xff]
        %v605 = vld [vmem:[#allocation2 + $0x90] sm:$0xff]
        %v606 = vld [vmem:[#allocation2 + $0x98] sm:$0xff]
        %v607 = vld [vmem:[#allocation2 + $0xa0] sm:$0xff]
        %v608 = vld [vmem:[#allocation2 + $0xa8] sm:$0xff]
        %v609 = vld [vmem:[#allocation2 + $0xb0] sm:$0xff]
        %v610 = vld [vmem:[#allocation2 + $0xb8] sm:$0xff]
        %v611 = vld [vmem:[#allocation2 + $0xc0] sm:$0xff]
        %v612 = vld [vmem:[#allocation2 + $0xc8] sm:$0xff]
        %v613 = vld [vmem:[#allocation2 + $0xd0] sm:$0xff]
        %v614 = vld [vmem:[#allocation2 + $0xd8] sm:$0xff]
        %v615 = vld [vmem:[#allocation2 + $0xe0] sm:$0xff]
        %v616 = vld [vmem:[#allocation2 + $0xe8] sm:$0xff]
        %v617 = vld [vmem:[#allocation2 + $0xf0] sm:$0xff]
        %v618 = vld [vmem:[#allocation2 + $0xf8] sm:$0xff]
        %v619 = vld [vmem:[#allocation2 + $0x100] sm:$0xff]
        %v620 = vld [vmem:[#allocation2 + $0x108] sm:$0xff]
        %v621 = vld [vmem:[#allocation2 + $0x110] sm:$0xff]
        %v622 = vld [vmem:[#allocation2 + $0x118] sm:$0xff]
        %v623 = vld [vmem:[#allocation2 + $0x120] sm:$0xff]
        %v624 = vld [vmem:[#allocation2 + $0x128] sm:$0xff]
        %v625 = vld [vmem:[#allocation2 + $0x130] sm:$0xff]
        %v626 = vld [vmem:[#allocation2 + $0x138] sm:$0xff]
        %v627 = vld [vmem:[#allocation2 + $0x140] sm:$0xff]
        %v628 = vld [vmem:[#allocation2 + $0x148] sm:$0xff]
        %v629 = vld [vmem:[#allocation2 + $0x150] sm:$0xff]
        %v630 = vld [vmem:[#allocation2 + $0x158] sm:$0xff]
        %v631 = vld [vmem:[#allocation2 + $0x160] sm:$0xff]
        %v632 = vld [vmem:[#allocation2 + $0x168] sm:$0xff]
        %v633 = vld [vmem:[#allocation2 + $0x170] sm:$0xff]
        %v634 = vld [vmem:[#allocation2 + $0x178] sm:$0xff]
        %v635 = vld [vmem:[#allocation2 + $0x180] sm:$0xff]
        %v636 = vld [vmem:[#allocation2 + $0x188] sm:$0xff]
        %v637 = vld [vmem:[#allocation2 + $0x190] sm:$0xff]
        %v638 = vld [vmem:[#allocation2 + $0x198] sm:$0xff]
        %v639 = vld [vmem:[#allocation2 + $0x1a0] sm:$0xff]
        %v640 = vld [vmem:[#allocation2 + $0x1a8] sm:$0xff]
        %v641 = vld [vmem:[#allocation2 + $0x1b0] sm:$0xff]
        %v642 = vld [vmem:[#allocation2 + $0x1b8] sm:$0xff]
        %v643 = vld [vmem:[#allocation2 + $0x1c0] sm:$0xff]
        %v644 = vld [vmem:[#allocation2 + $0x1c8] sm:$0xff]
        %v645 = vld [vmem:[#allocation2 + $0x1d0] sm:$0xff]
        %v646 = vld [vmem:[#allocation2 + $0x1d8] sm:$0xff]
        %v647 = vld [vmem:[#allocation2 + $0x1e0] sm:$0xff]
        %v648 = vld [vmem:[#allocation2 + $0x1e8] sm:$0xff]
        %v649 = vld [vmem:[#allocation2 + $0x1f0] sm:$0xff]
        %v650 = vld [vmem:[#allocation2 + $0x1f8] sm:$0xff]
        %651 = vmatprep.subr.mxu0 %v588
        %652 = vmatpush1.msra.mxu0 %v587
        %653 = vmatprep.subr.mxu0 %v590
        %654 = vmatpush1.msra.mxu0 %v589
        %655 = vmatprep.subr.mxu0 %v592
        %656 = vmatpush1.msra.mxu0 %v591
        %657 = vmatprep.subr.mxu0 %v594
        %658 = vmatpush1.msra.mxu0 %v593
        %659 = vmatprep.subr.mxu0 %v596
        %660 = vmatpush1.msra.mxu0 %v595
        %661 = vmatprep.subr.mxu0 %v598
        %662 = vmatpush1.msra.mxu0 %v597
        %663 = vmatprep.subr.mxu0 %v600
        %664 = vmatpush1.msra.mxu0 %v599
        %665 = vmatprep.subr.mxu0 %v602
        %666 = vmatpush1.msra.mxu0 %v601
        %667 = vmatprep.subr.mxu0 %v604
        %668 = vmatpush1.msra.mxu0 %v603
        %669 = vmatprep.subr.mxu0 %v606
        %670 = vmatpush1.msra.mxu0 %v605
        %671 = vmatprep.subr.mxu0 %v608
        %672 = vmatpush1.msra.mxu0 %v607
        %673 = vmatprep.subr.mxu0 %v610
        %674 = vmatpush1.msra.mxu0 %v609
        %675 = vmatprep.subr.mxu0 %v612
        %676 = vmatpush1.msra.mxu0 %v611
        %677 = vmatprep.subr.mxu0 %v614
        %678 = vmatpush1.msra.mxu0 %v613
        %679 = vmatprep.subr.mxu0 %v616
        %680 = vmatpush1.msra.mxu0 %v615
        %681 = vmatprep.subr.mxu0 %v618
        %682 = vmatpush1.msra.mxu0 %v617
        %683 = vmatprep.subr.mxu0 %v620
        %684 = vmatpush1.msra.mxu0 %v619
        %685 = vmatprep.subr.mxu0 %v622
        %686 = vmatpush1.msra.mxu0 %v621
        %687 = vmatprep.subr.mxu0 %v624
        %688 = vmatpush1.msra.mxu0 %v623
        %689 = vmatprep.subr.mxu0 %v626
        %690 = vmatpush1.msra.mxu0 %v625
        %691 = vmatprep.subr.mxu0 %v628
        %692 = vmatpush1.msra.mxu0 %v627
        %693 = vmatprep.subr.mxu0 %v630
        %694 = vmatpush1.msra.mxu0 %v629
        %695 = vmatprep.subr.mxu0 %v632
        %696 = vmatpush1.msra.mxu0 %v631
        %697 = vmatprep.subr.mxu0 %v634
        %698 = vmatpush1.msra.mxu0 %v633
        %699 = vmatprep.subr.mxu0 %v636
        %700 = vmatpush1.msra.mxu0 %v635
        %701 = vmatprep.subr.mxu0 %v638
        %702 = vmatpush1.msra.mxu0 %v637
        %703 = vmatprep.subr.mxu0 %v640
        %704 = vmatpush1.msra.mxu0 %v639
        %705 = vmatprep.subr.mxu0 %v642
        %706 = vmatpush1.msra.mxu0 %v641
        %707 = vmatprep.subr.mxu0 %v644
        %708 = vmatpush1.msra.mxu0 %v643
        %709 = vmatprep.subr.mxu0 %v646
        %710 = vmatpush1.msra.mxu0 %v645
        %711 = vmatprep.subr.mxu0 %v648
        %712 = vmatpush1.msra.mxu0 %v647
        %713 = vmatprep.subr.mxu0 %v650
        %714 = vmatpush1.msra.mxu0 %v649
        %715 = vmatprep.mubr.f32.mxu0 %v586
        %716 = vmatmul.mubr.f32.gmra.mrb[0].mxu0 %v585
        %v717 = vpop.f32.mrb[0].mxu0
        %v718 = vadd.f32 0.0, %v717
        %v719 = vpop.f32.mrb[0].mxu0
        %v720 = vadd.f32 0.0, %v719
        %721 = vdwg.mxu0
        %v722 = vmul.f32 %v718, %v718
        %v723 = vmul.f32 %v720, %v720
        %v724 = vadd.f32 %v722, %v723
        %v725 = vld [vmem:[#allocation3] sm:$0xff]
        %v726 = vadd.f32 %v725, %v724
        %727 = vst [vmem:[#allocation3] sm:$0xff] %v726
        // Predicated region
        $region41: #{tpu_custom_call.1} parent=27 // pred_check
          %p728 = pneg %p218
        $region42: #{tpu_custom_call.1} parent=27 // pred_check_branch
          %730 = sbr.rel (%p728) target = $region44
        $region43: #{tpu_custom_call.1} parent=27 // pred_region
          %v731 = vld [vmem:[#allocation3] sm:$0xff]
          %732 = vst [vmem:[%s215] sm:$0xff] %v731
        $region44: #{tpu_custom_call.1} parent=27 // pred_fallthru
          _
        %s733 = sand.u32 %s98, 1
        %s734 = scalar_lea.sflag [#allocation6], %s733
        %s735 = sand.u32 %s98, 1
        %s736 = smul.addr %s735, 8
        %s737 = scalar_lea.vmem [#allocation9], %s736
        // Predicated region
        $region45: #{tpu_custom_call.1} parent=27 // pred_check
          %p738 = pneg %p108
        $region46: #{tpu_custom_call.1} parent=27 // pred_check_branch
          %740 = sbr.rel (%p738) target = $region48
        $region47: #{tpu_custom_call.1} parent=27 // pred_region
          %s742 = ssub.s32 128, 128
          %743 = vsyncadd %s734, %s742
          %s744 = smul.addr %s26, 128
          %s745 = scalar_lea.hbm %s2, %s744
          %s747 = sshll.u32 %s737, 4
          %s748 = int_to_ptr.vmem [resolvable:$true] %s747
          %750 = dma.vmem_to_hbm [thread:$0]  %s748, 128, %s745, %s734
        $region48: #{tpu_custom_call.1} parent=27 // pred_fallthru
          _
      $region28: #{tpu_custom_call.1} parent=5 // pred_fallthru
        _
      %p751 = scmp.le.s32.totalorder 2, %s17
      // Predicated region
      $region49: #{tpu_custom_call.1} parent=5 // pred_check
        %p752 = pneg %p751
      $region50: #{tpu_custom_call.1} parent=5 // pred_check_branch
        %754 = sbr.rel (%p752) target = $region52
      $region51: #{tpu_custom_call.1} parent=5 // pred_region
        %s755 = ssub.s32 %s17, 2
        // Predicated region
        $region53: #{tpu_custom_call.1} parent=51 // pred_check
          %p756 = pneg %p114
        $region54: #{tpu_custom_call.1} parent=51 // pred_check_branch
          %758 = sbr.rel (%p756) target = $region56
        $region55: #{tpu_custom_call.1} parent=51 // pred_region
          %s759 = sand.u32 %s99, 1
          %s760 = scalar_lea.sflag [#allocation6], %s759
          %s761 = sand.u32 %s99, 1
          %s762 = smul.addr %s761, 8
          %s763 = scalar_lea.vmem [#allocation9], %s762
          %764 = dma.done %s760, 128
        $region56: #{tpu_custom_call.1} parent=51 // pred_fallthru
          _
      $region52: #{tpu_custom_call.1} parent=5 // pred_fallthru
        _
    $region6: #{tpu_custom_call.1} parent=1 // loop_footer
      %s21 = sadd.s32 1, %s17
    $region7: #{tpu_custom_call.1} parent=1 // loop_footer_branch
      %16 = sbr.rel target = $region3
    $region8: #{tpu_custom_call.1} parent=1 // loop_exit
      _
    %765 = vsyncpa [#allocation5], 1
    %s766 = scalar_lea.sflag [#allocation5], 1
    %767 = vsyncpa %s766, 1
    %768 = vsyncpa [#allocation8], 1
    %s769 = scalar_lea.sflag [#allocation8], 1
    %770 = vsyncpa %s769, 1
    %771 = vsyncpa [#allocation6], 1
    %s772 = scalar_lea.sflag [#allocation6], 1
    %773 = vsyncpa %s772, 1

</llo_original>
